<compile_context>
chip_gen: v5e
topology: v5e:2x2
jax: 0.10.0
libtpu: 0.0.40
codegen_flags: <defaults>
</compile_context>

<pallas_src>
import functools

import jax
import jax.numpy as jnp
import numpy as np
from jax.experimental import pallas as pl
from jax.experimental.pallas import tpu as pltpu

_MIB = 1024 * 1024


def _round_up(x, m):
    return ((x + m - 1) // m) * m


def _sublane(itemsize):
    # f32 -> 8 rows per packed sublane group, bf16 -> 16, int8/fp8 -> 32.
    return max(8, 32 // max(int(itemsize), 1))


def _tpu_vmem_and_cores():
    """Best-effort (per-TensorCore VMEM bytes, TensorCores per chip)."""
    vmem = 64 * _MIB            # conservative default = v7x per-core VMEM
    n_tc = 1
    try:
        info = pltpu.get_tpu_info()
        vmem = int(getattr(info, "vmem_capacity_bytes", vmem)) or vmem
        found = None
        for attr in ("num_tensorcores", "tensorcores_per_chip", "num_cores",
                     "cores_per_chip"):
            val = getattr(info, attr, None)
            if val:
                found = int(val)
                break
        # Heuristic fallback: 64 MiB-per-core chips (v7x) have 2 TensorCores.
        n_tc = found if found else (2 if vmem <= 64 * _MIB else 1)
    except Exception:
        pass
    return vmem, n_tc


def _plan_tiles(B, input_dim, dim_k, itemsize, out_itemsize, fuse_concat,
                vmem_budget, n_tc, tb=None, block_k=None):
    """Pick the batch tile (tb) and reduction tile (block_k) for the grid."""
    sub = _sublane(itemsize)
    w_bytes = input_dim * dim_k * itemsize

    # K (reduction) tiling is only engaged when W would eat too much VMEM.
    # It requires input_dim % 128 == 0 so every weight slab / G_v lane block
    # is layout-legal and the reduction never sees a ragged (garbage) K block.
    if block_k is None:
        if w_bytes > 0.4 * vmem_budget and input_dim % 128 == 0:
            slab_budget = max(int(0.4 * vmem_budget) // (2 * dim_k * itemsize), 128)
            block_k = min(input_dim, max(128, (slab_budget // 128) * 128))
            while input_dim % block_k:
                block_k -= 128
        else:
            # TODO(synk): very large W with input_dim not a multiple of 128
            # cannot be K-tiled safely here and stays fully VMEM-resident.
            block_k = input_dim
    assert input_dim % block_k == 0, "block_k must divide input_dim"
    k_grid = input_dim // block_k

    # VMEM accounting for the budget-driven batch tile.
    out_cols = dim_k + input_dim if fuse_concat else dim_k
    if k_grid == 1:
        w_resident = w_bytes                          # single-buffered (Buffered(1))
    else:
        w_resident = 2 * block_k * dim_k * itemsize   # double-buffered K slabs
    resident = w_resident + dim_k * itemsize          # + bias
    per_row = (2 * block_k * itemsize                 # G_v tile (double-buffered)
               + 2 * dim_k * itemsize                 # F_v tile (double-buffered)
               + 2 * out_cols * out_itemsize          # output tile (double-buffered)
               + dim_k * 4)                           # f32 accumulator scratch

    if tb is None:
        rows = (vmem_budget - resident) // per_row
        tb = max(sub, min(int(rows), 2048, _round_up(B, sub)))
        if n_tc > 1 and B >= 512:
            # >= 2 pipelined steps per TensorCore on megacore chips (v7x);
            # single-core chips (v5e/v6e) keep the largest tile (no split).
            tb = min(tb, _round_up(pl.cdiv(B, 2 * n_tc), sub))
        tb = max(sub, (tb // sub) * sub)
        if tb >= 256:
            tb = (tb // 256) * 256   # whole-MXU-pass LHS row tiles (v6e/v7x)
    else:
        tb = _round_up(int(tb), sub)
    return int(tb), int(block_k), int(k_grid), int(out_cols)


def _asym_attn_kernel(g_ref, f_ref, w_ref, b_ref, out_ref, acc_ref, *,
                      dim_k, block_k, k_grid, fuse_concat):
    # g_ref: (tb, block_k)   f_ref: (tb, dim_k)
    # w_ref: (block_k, dim_k)  b_ref: (1, dim_k)
    # out_ref: (tb, dim_k [+ input_dim])   acc_ref: (tb, dim_k) f32 scratch
    k = pl.program_id(1)

    @pl.when(k == 0)
    def _init():
        acc_ref[...] = jnp.zeros_like(acc_ref)

    # Partial-K MXU matmul with f32 accumulation (bf16 or f32 operands).
    acc_ref[...] += jnp.dot(g_ref[...], w_ref[...],
                            preferred_element_type=jnp.float32)

    if fuse_concat:
        # Stream the G_v passthrough half of the concat while it is in VMEM.
        g_out = g_ref[...].astype(out_ref.dtype)
        if k_grid == 1:
            out_ref[:, dim_k:] = g_out
        else:
            # Static unroll over K steps: every store has a static,
            # lane-aligned column offset (no dynamic minor-dim stores).
            for j in range(k_grid):
                @pl.when(k == j)
                def _store_g(j=j):
                    lo = dim_k + j * block_k
                    out_ref[:, lo:lo + block_k] = g_out

    @pl.when(k == k_grid - 1)
    def _finalize():
        g_lin = acc_ref[...] + b_ref[...].astype(jnp.float32)   # Linear bias
        f32_f = f_ref[...].astype(jnp.float32)
        j_m = jax.nn.sigmoid(f32_f + g_lin)                     # f32 gate (EUP)
        m_v = (j_m * f32_f).astype(out_ref.dtype)               # gate in f32
        if fuse_concat:
            out_ref[:, :dim_k] = m_v
        else:
            out_ref[...] = m_v


def asymmetric_attention(G_v, F_v, W, b, *, tb=None, block_k=None,
                         fuse_concat=None, vmem_budget_bytes=None,
                         vmem_limit_bytes=None):
    """Pallas TPU forward of Asymmetic_Attention.

    G_v: (B, input_dim), F_v: (B, dim_k), W: (input_dim, dim_k) -- the
    nn.Linear weight PRE-TRANSPOSED (pass `linear.weight.T`) -- b: (1, dim_k)
    or (dim_k,).  Returns concat([sigmoid(F_v + G_v@W + b) * F_v, G_v], axis=1).
    """
    B, input_dim = G_v.shape
    Bf, dim_k = F_v.shape
    assert B == Bf, "G_v and F_v must share the batch dimension"
    assert W.shape == (input_dim, dim_k), (
        "W must be the nn.Linear weight PRE-TRANSPOSED to (input_dim, dim_k); "
        "pass `linear.weight.T` from PyTorch (raw weight is (dim_k, input_dim)).")
    b = jnp.reshape(b, (1, dim_k))

    out_dtype = jnp.result_type(G_v.dtype, F_v.dtype)
    itemsize = max(jnp.dtype(G_v.dtype).itemsize, jnp.dtype(F_v.dtype).itemsize)
    out_itemsize = jnp.dtype(out_dtype).itemsize

    vmem_cap, n_tc = _tpu_vmem_and_cores()
    if vmem_budget_bytes is None:
        vmem_budget_bytes = int(vmem_cap * 0.6)     # ~38 MiB v7x / ~76 MiB v5e,v6e
    if vmem_limit_bytes is None:
        vmem_limit_bytes = max(int(vmem_cap * 0.75), vmem_budget_bytes + 8 * _MIB)

    if fuse_concat is None:
        # Fuse the concat into the kernel when the M_v/G_v column boundary is
        # lane-aligned (unmasked vector stores); otherwise emit only the
        # lane-dense M_v tiles and let the wrapper concatenate.
        fuse_concat = (dim_k % 128 == 0)

    tb, block_k, k_grid, out_cols = _plan_tiles(
        B, input_dim, dim_k, itemsize, out_itemsize, fuse_concat,
        vmem_budget_bytes, n_tc, tb=tb, block_k=block_k)

    nb = pl.cdiv(B, tb)   # ragged last block is masked -- no padding pass
    kernel = functools.partial(
        _asym_attn_kernel, dim_k=dim_k, block_k=block_k, k_grid=k_grid,
        fuse_concat=fuse_concat)

    def _call(single_buffer_resident):
        resident_kw = ({"pipeline_mode": pl.Buffered(1)}
                       if single_buffer_resident else {})
        if k_grid == 1:
            w_spec = pl.BlockSpec((block_k, dim_k), lambda i, k: (0, 0),
                                  **resident_kw)          # resident, 1 buffer
        else:
            w_spec = pl.BlockSpec((block_k, dim_k), lambda i, k: (k, 0))
        in_specs = [
            pl.BlockSpec((tb, block_k), lambda i, k: (i, k)),    # G_v
            pl.BlockSpec((tb, dim_k), lambda i, k: (i, 0)),      # F_v
            w_spec,                                              # W
            pl.BlockSpec((1, dim_k), lambda i, k: (0, 0),
                         **resident_kw),                         # bias
        ]
        out_specs = pl.BlockSpec((tb, out_cols), lambda i, k: (i, 0))
        return pl.pallas_call(
            kernel,
            out_shape=jax.ShapeDtypeStruct((B, out_cols), out_dtype),
            grid_spec=pltpu.PrefetchScalarGridSpec(
                num_scalar_prefetch=0,
                grid=(nb, k_grid),
                in_specs=in_specs,
                out_specs=out_specs,
                scratch_shapes=[pltpu.VMEM((tb, dim_k), jnp.float32)]),
            compiler_params=pltpu.CompilerParams(
                dimension_semantics=("parallel", "arbitrary"),
                vmem_limit_bytes=int(vmem_limit_bytes)),
        )(G_v, F_v, W, b)

    try:
        out = _call(True)
    except Exception:
        # pl.Buffered(1) (single-buffered resident operands) not accepted by
        # this jax build -- fall back to default double-buffering.
        out = _call(False)

    if fuse_concat:
        return out          # kernel already wrote concat([M_v, G_v], axis=1)
    return jnp.concatenate([out, G_v.astype(out_dtype)], axis=1)


def reference(G_v, F_v, W, b):
    g_lin = G_v @ W + jnp.reshape(b, (1, -1))
    j_m = jax.nn.sigmoid(F_v + g_lin)
    return jnp.concatenate([j_m * F_v, G_v], axis=1)


if __name__ == "__main__":
    # --- Test 1: module-sized small shapes (dim_k=32 is not lane-aligned ->
    # M_v-only kernel output + wrapper concat path).
    B, input_dim, dim_k = 8, 16, 32
    key = jax.random.PRNGKey(0)
    k_g, k_f, k_w, k_b = jax.random.split(key, 4)
    G_v = jax.random.normal(k_g, (B, input_dim), dtype=jnp.float32)
    F_v = jax.random.normal(k_f, (B, dim_k), dtype=jnp.float32)
    bound = 1.0 / np.sqrt(input_dim)   # nn.Linear default init range
    W = jax.random.uniform(k_w, (input_dim, dim_k), jnp.float32, -bound, bound)
    b = jax.random.uniform(k_b, (1, dim_k), jnp.float32, -bound, bound)

    out = jax.block_until_ready(asymmetric_attention(G_v, F_v, W, b))
    ref = reference(G_v, F_v, W, b)
    assert out.shape == (B, dim_k + input_dim)
    np.testing.assert_allclose(np.asarray(out), np.asarray(ref),
                               rtol=1e-5, atol=1e-5)

    # --- Test 2: ragged batch (B not a multiple of tb) -- masked last block,
    # no padding pass.
    B2 = 20
    k_g2, k_f2 = jax.random.split(jax.random.PRNGKey(1), 2)
    G2 = jax.random.normal(k_g2, (B2, input_dim), dtype=jnp.float32)
    F2 = jax.random.normal(k_f2, (B2, dim_k), dtype=jnp.float32)
    out2 = jax.block_until_ready(asymmetric_attention(G2, F2, W, b, tb=8))
    assert out2.shape == (B2, dim_k + input_dim)
    np.testing.assert_allclose(np.asarray(out2),
                               np.asarray(reference(G2, F2, W, b)),
                               rtol=1e-5, atol=1e-5)

    # --- Test 3: lane-aligned dim_k -> fused concat written by the kernel,
    # with K-tiling of the weight forced (block_k=128 over input_dim=256).
    B3, in3, dk3 = 24, 256, 128
    k_g3, k_f3, k_w3, k_b3 = jax.random.split(jax.random.PRNGKey(2), 4)
    G3 = jax.random.normal(k_g3, (B3, in3), dtype=jnp.float32)
    F3 = jax.random.normal(k_f3, (B3, dk3), dtype=jnp.float32)
    bound3 = 1.0 / np.sqrt(in3)
    W3 = jax.random.uniform(k_w3, (in3, dk3), jnp.float32, -bound3, bound3)
    b3 = jax.random.uniform(k_b3, (1, dk3), jnp.float32, -bound3, bound3)
    out3 = jax.block_until_ready(
        asymmetric_attention(G3, F3, W3, b3, tb=16, block_k=128))
    assert out3.shape == (B3, dk3 + in3)
    # Tolerance kept loose enough to be robust to the default MXU f32
    # precision mode while still catching any structural error.
    np.testing.assert_allclose(np.asarray(out3),
                               np.asarray(reference(G3, F3, W3, b3)),
                               rtol=1e-2, atol=1e-2)

    # --- Test 4: bf16 data path (halves HBM traffic on every generation;
    # matmul/bias/sigmoid still accumulate in f32 inside the kernel).
    G4, F4 = G3.astype(jnp.bfloat16), F3.astype(jnp.bfloat16)
    W4, b4 = W3.astype(jnp.bfloat16), b3.astype(jnp.bfloat16)
    out4 = jax.block_until_ready(asymmetric_attention(G4, F4, W4, b4))
    ref4 = reference(G4.astype(jnp.float32), F4.astype(jnp.float32),
                     W4.astype(jnp.float32), b4.astype(jnp.float32))
    assert out4.shape == (B3, dk3 + in3)
    np.testing.assert_allclose(np.asarray(out4, dtype=np.float32),
                               np.asarray(ref4), rtol=3e-2, atol=3e-2)

    print("KERNEL_OK")
</pallas_src>

<mosaic_0001>
module attributes {stable_mosaic.version = 11 : i64} {
  func.func @_asym_attn_kernel(%arg0: i32, %arg1: i32, %arg2: memref<8x16xf32, #tpu.memory_space<vmem>>, %arg3: memref<8x32xf32, #tpu.memory_space<vmem>>, %arg4: memref<16x32xf32, #tpu.memory_space<vmem>>, %arg5: memref<1x32xf32, #tpu.memory_space<vmem>>, %arg6: memref<8x32xf32, #tpu.memory_space<vmem>>, %arg7: memref<8x32xf32, #tpu.memory_space<vmem>>) attributes {dimension_semantics = [#tpu.dimension_semantics<parallel>, #tpu.dimension_semantics<arbitrary>], iteration_bounds = array<i64: 1, 1>, scalar_prefetch = 0 : i64, scratch_operands = 1 : i64, tpu.core_type = #tpu.core_type<tc>, window_params = [{transform_indices = @transform_0, window_bounds = array<i64: 8, 16>}, {transform_indices = @transform_1, window_bounds = array<i64: 8, 32>}, {pipeline_mode = #tpu.pipeline_mode<synchronous>, transform_indices = @transform_2, window_bounds = array<i64: 16, 32>}, {pipeline_mode = #tpu.pipeline_mode<synchronous>, transform_indices = @transform_3, window_bounds = array<i64: 1, 32>}, {transform_indices = @transform_4, window_bounds = array<i64: 8, 32>}]} {
    %c0_i32 = arith.constant 0 : i32
    %0 = arith.cmpi eq, %arg1, %c0_i32 : i32
    %1 = arith.extui %0 : i1 to i32
    %c0_i32_0 = arith.constant 0 : i32
    %2 = arith.cmpi ne, %1, %c0_i32_0 : i32
    scf.if %2 {
      %cst_10 = arith.constant 0.000000e+00 : f32
      %12 = vector.broadcast %cst_10 : f32 to vector<8x32xf32>
      %c0_11 = arith.constant 0 : index
      %c0_12 = arith.constant 0 : index
      %13 = vector.load %arg7[%c0_11, %c0_12] : memref<8x32xf32, #tpu.memory_space<vmem>>, vector<8x32xf32>
      tpu.vector_store %arg7[%c0_11, %c0_12], %12 {strides = array<i32>} : memref<8x32xf32, #tpu.memory_space<vmem>>, vector<8x32xf32>,
    } else {
    }
    %c0 = arith.constant 0 : index
    %c0_1 = arith.constant 0 : index
    %3 = vector.load %arg7[%c0, %c0_1] : memref<8x32xf32, #tpu.memory_space<vmem>>, vector<8x32xf32>
    %c0_2 = arith.constant 0 : index
    %c0_3 = arith.constant 0 : index
    %4 = vector.load %arg2[%c0_2, %c0_3] : memref<8x16xf32, #tpu.memory_space<vmem>>, vector<8x16xf32>
    %c0_4 = arith.constant 0 : index
    %c0_5 = arith.constant 0 : index
    %5 = vector.load %arg4[%c0_4, %c0_5] : memref<16x32xf32, #tpu.memory_space<vmem>>, vector<16x32xf32>
    %cst = arith.constant dense<0.000000e+00> : vector<8x32xf32>
    %6 = tpu.matmul %4, %5, %cst {dimension_numbers = #tpu.dot_dimension_numbers<[1], [0], [0], [1], [0, 0, 1, 1], [], []>} : vector<8x16xf32>, vector<16x32xf32>, vector<8x32xf32> -> vector<8x32xf32>
    %7 = arith.addf %3, %6 : vector<8x32xf32>
    %c0_6 = arith.constant 0 : index
    %c0_7 = arith.constant 0 : index
    %8 = vector.load %arg7[%c0_6, %c0_7] : memref<8x32xf32, #tpu.memory_space<vmem>>, vector<8x32xf32>
    tpu.vector_store %arg7[%c0_6, %c0_7], %7 {strides = array<i32>} : memref<8x32xf32, #tpu.memory_space<vmem>>, vector<8x32xf32>,
    %c0_i32_8 = arith.constant 0 : i32
    %9 = arith.cmpi eq, %arg1, %c0_i32_8 : i32
    %10 = arith.extui %9 : i1 to i32
    %c0_i32_9 = arith.constant 0 : i32
    %11 = arith.cmpi ne, %10, %c0_i32_9 : i32
    scf.if %11 {
      %c0_10 = arith.constant 0 : index
      %c0_11 = arith.constant 0 : index
      %12 = vector.load %arg7[%c0_10, %c0_11] : memref<8x32xf32, #tpu.memory_space<vmem>>, vector<8x32xf32>
      %c0_12 = arith.constant 0 : index
      %c0_13 = arith.constant 0 : index
      %13 = vector.load %arg5[%c0_12, %c0_13] : memref<1x32xf32, #tpu.memory_space<vmem>>, vector<1x32xf32>
      %14 = vector.broadcast %13 : vector<1x32xf32> to vector<8x32xf32>
      %15 = arith.addf %12, %14 : vector<8x32xf32>
      %c0_14 = arith.constant 0 : index
      %c0_15 = arith.constant 0 : index
      %16 = vector.load %arg3[%c0_14, %c0_15] : memref<8x32xf32, #tpu.memory_space<vmem>>, vector<8x32xf32>
      %17 = arith.addf %16, %15 : vector<8x32xf32>
      %18 = arith.negf %17 : vector<8x32xf32>
      %19 = math.exp %18 : vector<8x32xf32>
      %cst_16 = arith.constant 1.000000e+00 : f32
      %20 = vector.broadcast %cst_16 : f32 to vector<8x32xf32>
      %21 = arith.addf %20, %19 : vector<8x32xf32>
      %22 = arith.divf %20, %21 : vector<8x32xf32>
      %23 = arith.mulf %22, %16 : vector<8x32xf32>
      %c0_17 = arith.constant 0 : index
      %c0_18 = arith.constant 0 : index
      %24 = vector.load %arg6[%c0_17, %c0_18] : memref<8x32xf32, #tpu.memory_space<vmem>>, vector<8x32xf32>
      tpu.vector_store %arg6[%c0_17, %c0_18], %23 {strides = array<i32>} : memref<8x32xf32, #tpu.memory_space<vmem>>, vector<8x32xf32>,
    } else {
    }
    return
  }
  func.func @transform_0(%arg0: i32, %arg1: i32) -> (i32, i32) {
    %c0_i32 = arith.constant 0 : i32
    return %arg0, %arg1 : i32, i32
  }
  func.func @transform_1(%arg0: i32, %arg1: i32) -> (i32, i32) {
    %c0_i32 = arith.constant 0 : i32
    %c0_i32_0 = arith.constant 0 : i32
    return %arg0, %c0_i32 : i32, i32
  }
  func.func @transform_2(%arg0: i32, %arg1: i32) -> (i32, i32) {
    %c0_i32 = arith.constant 0 : i32
    %c0_i32_0 = arith.constant 0 : i32
    %c0_i32_1 = arith.constant 0 : i32
    return %c0_i32, %c0_i32_0 : i32, i32
  }
  func.func @transform_3(%arg0: i32, %arg1: i32) -> (i32, i32) {
    %c0_i32 = arith.constant 0 : i32
    %c0_i32_0 = arith.constant 0 : i32
    %c0_i32_1 = arith.constant 0 : i32
    return %c0_i32, %c0_i32_0 : i32, i32
  }
  func.func @transform_4(%arg0: i32, %arg1: i32) -> (i32, i32) {
    %c0_i32 = arith.constant 0 : i32
    %c0_i32_0 = arith.constant 0 : i32
    return %arg0, %c0_i32 : i32, i32
  }
}

module attributes {stable_mosaic.version = 11 : i64} {
  func.func @_asym_attn_kernel(%arg0: i32, %arg1: i32, %arg2: memref<8x16xf32, #tpu.memory_space<vmem>>, %arg3: memref<8x32xf32, #tpu.memory_space<vmem>>, %arg4: memref<16x32xf32, #tpu.memory_space<vmem>>, %arg5: memref<1x32xf32, #tpu.memory_space<vmem>>, %arg6: memref<8x32xf32, #tpu.memory_space<vmem>>, %arg7: memref<8x32xf32, #tpu.memory_space<vmem>>) attributes {dimension_semantics = [#tpu.dimension_semantics<parallel>, #tpu.dimension_semantics<arbitrary>], iteration_bounds = array<i64: 1, 1>, scalar_prefetch = 0 : i64, scratch_operands = 1 : i64, tpu.core_type = #tpu.core_type<tc>, window_params = [{transform_indices = @transform_0, window_bounds = array<i64: 8, 16>}, {transform_indices = @transform_1, window_bounds = array<i64: 8, 32>}, {pipeline_mode = #tpu.pipeline_mode<synchronous>, transform_indices = @transform_2, window_bounds = array<i64: 16, 32>}, {pipeline_mode = #tpu.pipeline_mode<synchronous>, transform_indices = @transform_3, window_bounds = array<i64: 1, 32>}, {transform_indices = @transform_4, window_bounds = array<i64: 8, 32>}]} {
    %c0_i32 = arith.constant 0 : i32
    %0 = arith.cmpi eq, %arg1, %c0_i32 : i32
    %1 = arith.extui %0 : i1 to i32
    %c0_i32_0 = arith.constant 0 : i32
    %2 = arith.cmpi ne, %1, %c0_i32_0 : i32
    scf.if %2 {
      %cst_10 = arith.constant 0.000000e+00 : f32
      %12 = vector.broadcast %cst_10 : f32 to vector<8x32xf32>
      %c0_11 = arith.constant 0 : index
      %c0_12 = arith.constant 0 : index
      %13 = vector.load %arg7[%c0_11, %c0_12] : memref<8x32xf32, #tpu.memory_space<vmem>>, vector<8x32xf32>
      tpu.vector_store %arg7[%c0_11, %c0_12], %12 {strides = array<i32>} : memref<8x32xf32, #tpu.memory_space<vmem>>, vector<8x32xf32>,
    } else {
    }
    %c0 = arith.constant 0 : index
    %c0_1 = arith.constant 0 : index
    %3 = vector.load %arg7[%c0, %c0_1] : memref<8x32xf32, #tpu.memory_space<vmem>>, vector<8x32xf32>
    %c0_2 = arith.constant 0 : index
    %c0_3 = arith.constant 0 : index
    %4 = vector.load %arg2[%c0_2, %c0_3] : memref<8x16xf32, #tpu.memory_space<vmem>>, vector<8x16xf32>
    %c0_4 = arith.constant 0 : index
    %c0_5 = arith.constant 0 : index
    %5 = vector.load %arg4[%c0_4, %c0_5] : memref<16x32xf32, #tpu.memory_space<vmem>>, vector<16x32xf32>
    %cst = arith.constant dense<0.000000e+00> : vector<8x32xf32>
    %6 = tpu.matmul %4, %5, %cst {dimension_numbers = #tpu.dot_dimension_numbers<[1], [0], [0], [1], [0, 0, 1, 1], [], []>} : vector<8x16xf32>, vector<16x32xf32>, vector<8x32xf32> -> vector<8x32xf32>
    %7 = arith.addf %3, %6 : vector<8x32xf32>
    %c0_6 = arith.constant 0 : index
    %c0_7 = arith.constant 0 : index
    %8 = vector.load %arg7[%c0_6, %c0_7] : memref<8x32xf32, #tpu.memory_space<vmem>>, vector<8x32xf32>
    tpu.vector_store %arg7[%c0_6, %c0_7], %7 {strides = array<i32>} : memref<8x32xf32, #tpu.memory_space<vmem>>, vector<8x32xf32>,
    %c0_i32_8 = arith.constant 0 : i32
    %9 = arith.cmpi eq, %arg1, %c0_i32_8 : i32
    %10 = arith.extui %9 : i1 to i32
    %c0_i32_9 = arith.constant 0 : i32
    %11 = arith.cmpi ne, %10, %c0_i32_9 : i32
    scf.if %11 {
      %c0_10 = arith.constant 0 : index
      %c0_11 = arith.constant 0 : index
      %12 = vector.load %arg7[%c0_10, %c0_11] : memref<8x32xf32, #tpu.memory_space<vmem>>, vector<8x32xf32>
      %c0_12 = arith.constant 0 : index
      %c0_13 = arith.constant 0 : index
      %13 = vector.load %arg5[%c0_12, %c0_13] : memref<1x32xf32, #tpu.memory_space<vmem>>, vector<1x32xf32>
      %14 = vector.broadcast %13 : vector<1x32xf32> to vector<8x32xf32>
      %15 = arith.addf %12, %14 : vector<8x32xf32>
      %c0_14 = arith.constant 0 : index
      %c0_15 = arith.constant 0 : index
      %16 = vector.load %arg3[%c0_14, %c0_15] : memref<8x32xf32, #tpu.memory_space<vmem>>, vector<8x32xf32>
      %17 = arith.addf %16, %15 : vector<8x32xf32>
      %18 = arith.negf %17 : vector<8x32xf32>
      %19 = math.exp %18 : vector<8x32xf32>
      %cst_16 = arith.constant 1.000000e+00 : f32
      %20 = vector.broadcast %cst_16 : f32 to vector<8x32xf32>
      %21 = arith.addf %20, %19 : vector<8x32xf32>
      %22 = arith.divf %20, %21 : vector<8x32xf32>
      %23 = arith.mulf %22, %16 : vector<8x32xf32>
      %c0_17 = arith.constant 0 : index
      %c0_18 = arith.constant 0 : index
      %24 = vector.load %arg6[%c0_17, %c0_18] : memref<8x32xf32, #tpu.memory_space<vmem>>, vector<8x32xf32>
      tpu.vector_store %arg6[%c0_17, %c0_18], %23 {strides = array<i32>} : memref<8x32xf32, #tpu.memory_space<vmem>>, vector<8x32xf32>,
    } else {
    }
    return
  }
  func.func @transform_0(%arg0: i32, %arg1: i32) -> (i32, i32) {
    %c0_i32 = arith.constant 0 : i32
    return %arg0, %arg1 : i32, i32
  }
  func.func @transform_1(%arg0: i32, %arg1: i32) -> (i32, i32) {
    %c0_i32 = arith.constant 0 : i32
    %c0_i32_0 = arith.constant 0 : i32
    return %arg0, %c0_i32 : i32, i32
  }
  func.func @transform_2(%arg0: i32, %arg1: i32) -> (i32, i32) {
    %c0_i32 = arith.constant 0 : i32
    %c0_i32_0 = arith.constant 0 : i32
    %c0_i32_1 = arith.constant 0 : i32
    return %c0_i32, %c0_i32_0 : i32, i32
  }
  func.func @transform_3(%arg0: i32, %arg1: i32) -> (i32, i32) {
    %c0_i32 = arith.constant 0 : i32
    %c0_i32_0 = arith.constant 0 : i32
    %c0_i32_1 = arith.constant 0 : i32
    return %c0_i32, %c0_i32_0 : i32, i32
  }
  func.func @transform_4(%arg0: i32, %arg1: i32) -> (i32, i32) {
    %c0_i32 = arith.constant 0 : i32
    %c0_i32_0 = arith.constant 0 : i32
    return %arg0, %c0_i32 : i32, i32
  }
}

</mosaic_0001>

<llo_original>
// kernel: tpu_custom_call.1
$region0: #{tpu_custom_call.1}
  #allocation0 [shape = 'u32[]', space=smem, size = 0x4, offset = 0x4, fixed_abs, tag = 'smem constant byte address 0x4 - core index']
  #allocation1 [shape = 'u32[72,128]{1,0:T(1,128)}', space=vmem, size = 0x9000, scoped, tag = 'internal scratch']
  #allocation2 [shape = 'f32[8,32]{1,0:T(8,128)}', space=vmem, size = 0x1000, scoped, tag = 'scratch operand']
  %s0 = inlined_call_operand.hbm [shape: f32[8,16], index: 0, kind: input, shape index: {}]
  %s1 = inlined_call_operand.hbm [shape: f32[8,32], index: 1, kind: input, shape index: {}]
  %s2 = inlined_call_operand.hbm [shape: f32[16,32], index: 2, kind: input, shape index: {}]
  %s3 = inlined_call_operand.vmem [shape: f32[1,32], index: 3, kind: input, shape index: {}]
  %s4 = inlined_call_operand.hbm [shape: f32[8,32], index: 4, kind: output, shape index: {}]
  %s5 = sld [smem:[#allocation0]]
  $region46: #{tpu_custom_call.1} parent=0
    _
  %s7 = ssub.s32 1, %s5
  %s8 = scalar_select 0, %s7, %s5
  $region1: #{tpu_custom_call.1} parent=0
    #allocation3 [shape = 'u8[4096]{0}', space=vmem, size = 0x1000, scoped, tag = 'input window, operand 0, single buffered']
    #allocation4 [shape = 's32[1]{0}', space=sflag, size = 0x4, scoped, tag = 'scoped memory for tpu_custom_call.1']
    #allocation5 [shape = 's32[1]{0}', space=sflag, size = 0x4, scoped, tag = 'scoped memory for tpu_custom_call.1']
    #allocation6 [shape = 'u8[4096]{0}', space=vmem, size = 0x1000, scoped, tag = 'input window, operand 1, single buffered']
    #allocation7 [shape = 's32[1]{0}', space=sflag, size = 0x4, scoped, tag = 'scoped memory for tpu_custom_call.1']
    #allocation8 [shape = 'u8[8192]{0}', space=vmem, size = 0x2000, scoped, tag = 'input window, operand 2, single buffered']
    #allocation9 [shape = 'u8[4096]{0}', space=vmem, size = 0x1000, scoped, tag = 'output window, operand 0, single buffered']
    %9 = vsyncpa [#allocation4], 0
    %10 = vsyncpa [#allocation7], 0
    %11 = vsyncpa [#allocation5], 0
    // Predicated region
    $region2: #{tpu_custom_call.1} parent=1 // pred_check
      _
    $region3: #{tpu_custom_call.1} parent=1 // pred_check_branch
      %13 = sbr.rel (0) target = $region5
    $region4: #{tpu_custom_call.1} parent=1 // pred_region
      %15 = vsyncadd [#allocation4], 0
      %s17 = sshll.u32 %s0, 4
      %s18 = int_to_ptr.hbm [resolvable:$true] %s17
      %s19 = sshll.u32 [#allocation3], 4
      %s20 = int_to_ptr.vmem [resolvable:$true] %s19
      %22 = dma.hbm_to_vmem [thread:$0]  %s18, 128, %s20, [#allocation4]
    $region5: #{tpu_custom_call.1} parent=1 // pred_fallthru
      _
    // Predicated region
    $region6: #{tpu_custom_call.1} parent=1 // pred_check
      _
    $region7: #{tpu_custom_call.1} parent=1 // pred_check_branch
      %24 = sbr.rel (0) target = $region9
    $region8: #{tpu_custom_call.1} parent=1 // pred_region
      %26 = vsyncadd [#allocation7], 0
      %s28 = sshll.u32 %s1, 4
      %s29 = int_to_ptr.hbm [resolvable:$true] %s28
      %s30 = sshll.u32 [#allocation6], 4
      %s31 = int_to_ptr.vmem [resolvable:$true] %s30
      %33 = dma.hbm_to_vmem [thread:$0]  %s29, 128, %s31, [#allocation7]
    $region9: #{tpu_custom_call.1} parent=1 // pred_fallthru
      _
    // Predicated region
    $region10: #{tpu_custom_call.1} parent=1 // pred_check
      _
    $region11: #{tpu_custom_call.1} parent=1 // pred_check_branch
      %35 = sbr.rel (0) target = $region13
    $region12: #{tpu_custom_call.1} parent=1 // pred_region
      %37 = vsyncadd [#allocation7], 0
      %s38 = sshll.u32 %s2, 4
      %s39 = int_to_ptr.hbm [resolvable:$true] %s38
      %s40 = sshll.u32 [#allocation8], 4
      %s41 = int_to_ptr.vmem [resolvable:$true] %s40
      %46 = dma.hbm_to_vmem [thread:$0]  %s39, 256, %s41, [#allocation7], 128, 128, 8
    $region13: #{tpu_custom_call.1} parent=1 // pred_fallthru
      _
    // Predicated region
    $region14: #{tpu_custom_call.1} parent=1 // pred_check
      _
    $region15: #{tpu_custom_call.1} parent=1 // pred_check_branch
      %48 = sbr.rel (0) target = $region17
    $region16: #{tpu_custom_call.1} parent=1 // pred_region
      _
    $region17: #{tpu_custom_call.1} parent=1 // pred_fallthru
      _
    // Predicated region
    $region18: #{tpu_custom_call.1} parent=1 // pred_check
      _
    $region19: #{tpu_custom_call.1} parent=1 // pred_check_branch
      %50 = sbr.rel (0) target = $region21
    $region20: #{tpu_custom_call.1} parent=1 // pred_region
      %52 = dma.done [#allocation4], 128
    $region21: #{tpu_custom_call.1} parent=1 // pred_fallthru
      _
    // Predicated region
    $region22: #{tpu_custom_call.1} parent=1 // pred_check
      _
    $region23: #{tpu_custom_call.1} parent=1 // pred_check_branch
      %54 = sbr.rel (0) target = $region25
    $region24: #{tpu_custom_call.1} parent=1 // pred_region
      %56 = dma.done [#allocation7], 128
    $region25: #{tpu_custom_call.1} parent=1 // pred_fallthru
      _
    // Predicated region
    $region26: #{tpu_custom_call.1} parent=1 // pred_check
      _
    $region27: #{tpu_custom_call.1} parent=1 // pred_check_branch
      %58 = sbr.rel (0) target = $region29
    $region28: #{tpu_custom_call.1} parent=1 // pred_region
      %60 = dma.done [#allocation7], 256
    $region29: #{tpu_custom_call.1} parent=1 // pred_fallthru
      _
    %p61 = scmp.eq.s32.totalorder 0, 0
    // Predicated region
    $region30: #{tpu_custom_call.1} parent=1 // pred_check
      %p62 = pneg %p61
    $region31: #{tpu_custom_call.1} parent=1 // pred_check_branch
      %64 = sbr.rel (%p62) target = $region33
    $region32: #{tpu_custom_call.1} parent=1 // pred_region
      %vm65 = vcmask 261120
      %66 = vst.msk [vmem:[#allocation2] sm:$0xff] %vm65, 0.0
    $region33: #{tpu_custom_call.1} parent=1 // pred_fallthru
      _
    %v67 = vld [vmem:[#allocation2] sm:$0xff]
    %v68 = vld [vmem:[#allocation3] sm:$0xff]
    %v69 = vld [vmem:[#allocation8] sm:$0xff]
    %v70 = vld [vmem:[#allocation8 + $0x8] sm:$0xff]
    %vm71 = vcmask 130048
    %v73 = vsel %vm71, %v68, 0
    %75 = vmatpush.msra.mxu0 0.0
    %76 = vmatpush.msra.mxu0 0.0
    %77 = vmatpush.msra.mxu0 0.0
    %78 = vmatpush.msra.mxu0 0.0
    %79 = vmatpush.msra.mxu0 0.0
    %80 = vmatpush.msra.mxu0 0.0
    %81 = vmatpush.msra.mxu0 0.0
    %82 = vmatpush.msra.mxu0 0.0
    %83 = vmatpush.msra.mxu0 0.0
    %84 = vmatpush.msra.mxu0 0.0
    %85 = vmatpush.msra.mxu0 0.0
    %86 = vmatpush.msra.mxu0 0.0
    %87 = vmatpush.msra.mxu0 0.0
    %88 = vmatpush.msra.mxu0 0.0
    %89 = vmatpush.msra.mxu0 %v70
    %90 = vmatpush.msra.mxu0 %v69
    %91 = vmatmul.f32.gmra.mxu0 %v73
    %v92 = vpop.f32.mrf.mxu0
    %v93 = vadd.f32 0.0, %v92
    %94 = vdwg.mxu0
    %v95 = vadd.f32 %v67, %v93
    %vm96 = vcmask 261120
    %97 = vst.msk [vmem:[#allocation2] sm:$0xff] %vm96, %v95
    // Predicated region
    $region34: #{tpu_custom_call.1} parent=1 // pred_check
      %p98 = pneg %p61
    $region35: #{tpu_custom_call.1} parent=1 // pred_check_branch
      %100 = sbr.rel (%p98) target = $region37
    $region36: #{tpu_custom_call.1} parent=1 // pred_region
      %v101 = vld [vmem:[#allocation2] sm:$0xff]
      %v102 = vld [vmem:[%s3] sm:$0x1]
      %v104 = vperm.slane %v102, 0
      %v106 = vadd.f32 %v101, %v104
      %v107 = vld [vmem:[#allocation6] sm:$0xff]
      %v108 = vadd.f32 %v107, %v106
      %v109 = vxor.u32 %v108, 2147483648
      %v110 = vmul.f32 %v109, 1.442695
      %v111 = vpow.pop %v110
      %v112 = vadd.f32 %v111, 1.0
      %v113 = vrcp.pop %v112
      %v114 = vmul.f32 %v112, %v113
      %v115 = vsub.f32 1.0, %v114
      %v116 = vmul.f32 %v113, %v115
      %v117 = vadd.f32 %v113, %v116
      %vm118 = vweird.f32 %v112
      %vm119 = vweird.f32 %v113
      %vm120 = vmor %vm118, %vm119
      %v121 = vsel %vm120, %v113, %v117
      %v122 = vand.u32 2147483647, %v112
      %vm123 = vcmp.eq.f32.partialorder %v122, 8.507059e+37
      %v124 = vand.u32 %v112, 2147483648
      %v125 = vor.u32 1.1754944e-38, %v124
      %v126 = vsel %vm123, %v125, %v121
      %v127 = vmul.f32 1.0, %v126
      %v128 = vmul.f32 %v127, %v107
      %129 = vst.msk [vmem:[#allocation9] sm:$0xff] %vm96, %v128
    $region37: #{tpu_custom_call.1} parent=1 // pred_fallthru
      _
    // Predicated region
    $region38: #{tpu_custom_call.1} parent=1 // pred_check
      _
    $region39: #{tpu_custom_call.1} parent=1 // pred_check_branch
      %131 = sbr.rel (0) target = $region41
    $region40: #{tpu_custom_call.1} parent=1 // pred_region
      %133 = vsyncadd [#allocation5], 0
      %s135 = sshll.u32 [#allocation9], 4
      %s136 = int_to_ptr.vmem [resolvable:$true] %s135
      %s137 = sshll.u32 %s4, 4
      %s138 = int_to_ptr.hbm [resolvable:$true] %s137
      %140 = dma.vmem_to_hbm [thread:$0]  %s136, 128, %s138, [#allocation5]
    $region41: #{tpu_custom_call.1} parent=1 // pred_fallthru
      _
    // Predicated region
    $region42: #{tpu_custom_call.1} parent=1 // pred_check
      _
    $region43: #{tpu_custom_call.1} parent=1 // pred_check_branch
      %142 = sbr.rel (0) target = $region45
    $region44: #{tpu_custom_call.1} parent=1 // pred_region
      %144 = dma.done [#allocation5], 128
    $region45: #{tpu_custom_call.1} parent=1 // pred_fallthru
      _
    %145 = vsyncpa [#allocation4], 1
    %146 = vsyncpa [#allocation7], 1
    %147 = vsyncpa [#allocation5], 1

// kernel: tpu_custom_call.1
$region0: #{tpu_custom_call.1}
  #allocation0 [shape = 'u32[]', space=smem, size = 0x4, offset = 0x4, fixed_abs, tag = 'smem constant byte address 0x4 - core index']
  #allocation1 [shape = 'u32[72,128]{1,0:T(1,128)}', space=vmem, size = 0x9000, scoped, tag = 'internal scratch']
  #allocation2 [shape = 'f32[8,32]{1,0:T(8,128)}', space=vmem, size = 0x1000, scoped, tag = 'scratch operand']
  %s0 = inlined_call_operand.hbm [shape: f32[8,16], index: 0, kind: input, shape index: {}]
  %s1 = inlined_call_operand.hbm [shape: f32[8,32], index: 1, kind: input, shape index: {}]
  %s2 = inlined_call_operand.hbm [shape: f32[16,32], index: 2, kind: input, shape index: {}]
  %s3 = inlined_call_operand.vmem [shape: f32[1,32], index: 3, kind: input, shape index: {}]
  %s4 = inlined_call_operand.hbm [shape: f32[8,32], index: 4, kind: output, shape index: {}]
  %s5 = sld [smem:[#allocation0]]
  $region46: #{tpu_custom_call.1} parent=0
    _
  %s7 = ssub.s32 1, %s5
  %s8 = scalar_select 0, %s7, %s5
  $region1: #{tpu_custom_call.1} parent=0
    #allocation3 [shape = 'u8[4096]{0}', space=vmem, size = 0x1000, scoped, tag = 'input window, operand 0, single buffered']
    #allocation4 [shape = 's32[1]{0}', space=sflag, size = 0x4, scoped, tag = 'scoped memory for tpu_custom_call.1']
    #allocation5 [shape = 's32[1]{0}', space=sflag, size = 0x4, scoped, tag = 'scoped memory for tpu_custom_call.1']
    #allocation6 [shape = 'u8[4096]{0}', space=vmem, size = 0x1000, scoped, tag = 'input window, operand 1, single buffered']
    #allocation7 [shape = 's32[1]{0}', space=sflag, size = 0x4, scoped, tag = 'scoped memory for tpu_custom_call.1']
    #allocation8 [shape = 'u8[8192]{0}', space=vmem, size = 0x2000, scoped, tag = 'input window, operand 2, single buffered']
    #allocation9 [shape = 'u8[4096]{0}', space=vmem, size = 0x1000, scoped, tag = 'output window, operand 0, single buffered']
    %9 = vsyncpa [#allocation4], 0
    %10 = vsyncpa [#allocation7], 0
    %11 = vsyncpa [#allocation5], 0
    // Predicated region
    $region2: #{tpu_custom_call.1} parent=1 // pred_check
      _
    $region3: #{tpu_custom_call.1} parent=1 // pred_check_branch
      %13 = sbr.rel (0) target = $region5
    $region4: #{tpu_custom_call.1} parent=1 // pred_region
      %15 = vsyncadd [#allocation4], 0
      %s17 = sshll.u32 %s0, 4
      %s18 = int_to_ptr.hbm [resolvable:$true] %s17
      %s19 = sshll.u32 [#allocation3], 4
      %s20 = int_to_ptr.vmem [resolvable:$true] %s19
      %22 = dma.hbm_to_vmem [thread:$0]  %s18, 128, %s20, [#allocation4]
    $region5: #{tpu_custom_call.1} parent=1 // pred_fallthru
      _
    // Predicated region
    $region6: #{tpu_custom_call.1} parent=1 // pred_check
      _
    $region7: #{tpu_custom_call.1} parent=1 // pred_check_branch
      %24 = sbr.rel (0) target = $region9
    $region8: #{tpu_custom_call.1} parent=1 // pred_region
      %26 = vsyncadd [#allocation7], 0
      %s28 = sshll.u32 %s1, 4
      %s29 = int_to_ptr.hbm [resolvable:$true] %s28
      %s30 = sshll.u32 [#allocation6], 4
      %s31 = int_to_ptr.vmem [resolvable:$true] %s30
      %33 = dma.hbm_to_vmem [thread:$0]  %s29, 128, %s31, [#allocation7]
    $region9: #{tpu_custom_call.1} parent=1 // pred_fallthru
      _
    // Predicated region
    $region10: #{tpu_custom_call.1} parent=1 // pred_check
      _
    $region11: #{tpu_custom_call.1} parent=1 // pred_check_branch
      %35 = sbr.rel (0) target = $region13
    $region12: #{tpu_custom_call.1} parent=1 // pred_region
      %37 = vsyncadd [#allocation7], 0
      %s38 = sshll.u32 %s2, 4
      %s39 = int_to_ptr.hbm [resolvable:$true] %s38
      %s40 = sshll.u32 [#allocation8], 4
      %s41 = int_to_ptr.vmem [resolvable:$true] %s40
      %46 = dma.hbm_to_vmem [thread:$0]  %s39, 256, %s41, [#allocation7], 128, 128, 8
    $region13: #{tpu_custom_call.1} parent=1 // pred_fallthru
      _
    // Predicated region
    $region14: #{tpu_custom_call.1} parent=1 // pred_check
      _
    $region15: #{tpu_custom_call.1} parent=1 // pred_check_branch
      %48 = sbr.rel (0) target = $region17
    $region16: #{tpu_custom_call.1} parent=1 // pred_region
      _
    $region17: #{tpu_custom_call.1} parent=1 // pred_fallthru
      _
    // Predicated region
    $region18: #{tpu_custom_call.1} parent=1 // pred_check
      _
    $region19: #{tpu_custom_call.1} parent=1 // pred_check_branch
      %50 = sbr.rel (0) target = $region21
    $region20: #{tpu_custom_call.1} parent=1 // pred_region
      %52 = dma.done [#allocation4], 128
    $region21: #{tpu_custom_call.1} parent=1 // pred_fallthru
      _
    // Predicated region
    $region22: #{tpu_custom_call.1} parent=1 // pred_check
      _
    $region23: #{tpu_custom_call.1} parent=1 // pred_check_branch
      %54 = sbr.rel (0) target = $region25
    $region24: #{tpu_custom_call.1} parent=1 // pred_region
      %56 = dma.done [#allocation7], 128
    $region25: #{tpu_custom_call.1} parent=1 // pred_fallthru
      _
    // Predicated region
    $region26: #{tpu_custom_call.1} parent=1 // pred_check
      _
    $region27: #{tpu_custom_call.1} parent=1 // pred_check_branch
      %58 = sbr.rel (0) target = $region29
    $region28: #{tpu_custom_call.1} parent=1 // pred_region
      %60 = dma.done [#allocation7], 256
    $region29: #{tpu_custom_call.1} parent=1 // pred_fallthru
      _
    %p61 = scmp.eq.s32.totalorder 0, 0
    // Predicated region
    $region30: #{tpu_custom_call.1} parent=1 // pred_check
      %p62 = pneg %p61
    $region31: #{tpu_custom_call.1} parent=1 // pred_check_branch
      %64 = sbr.rel (%p62) target = $region33
    $region32: #{tpu_custom_call.1} parent=1 // pred_region
      %vm65 = vcmask 261120
      %66 = vst.msk [vmem:[#allocation2] sm:$0xff] %vm65, 0.0
    $region33: #{tpu_custom_call.1} parent=1 // pred_fallthru
      _
    %v67 = vld [vmem:[#allocation2] sm:$0xff]
    %v68 = vld [vmem:[#allocation3] sm:$0xff]
    %v69 = vld [vmem:[#allocation8] sm:$0xff]
    %v70 = vld [vmem:[#allocation8 + $0x8] sm:$0xff]
    %vm71 = vcmask 130048
    %v73 = vsel %vm71, %v68, 0
    %75 = vmatpush.msra.mxu0 0.0
    %76 = vmatpush.msra.mxu0 0.0
    %77 = vmatpush.msra.mxu0 0.0
    %78 = vmatpush.msra.mxu0 0.0
    %79 = vmatpush.msra.mxu0 0.0
    %80 = vmatpush.msra.mxu0 0.0
    %81 = vmatpush.msra.mxu0 0.0
    %82 = vmatpush.msra.mxu0 0.0
    %83 = vmatpush.msra.mxu0 0.0
    %84 = vmatpush.msra.mxu0 0.0
    %85 = vmatpush.msra.mxu0 0.0
    %86 = vmatpush.msra.mxu0 0.0
    %87 = vmatpush.msra.mxu0 0.0
    %88 = vmatpush.msra.mxu0 0.0
    %89 = vmatpush.msra.mxu0 %v70
    %90 = vmatpush.msra.mxu0 %v69
    %91 = vmatmul.f32.gmra.mxu0 %v73
    %v92 = vpop.f32.mrf.mxu0
    %v93 = vadd.f32 0.0, %v92
    %94 = vdwg.mxu0
    %v95 = vadd.f32 %v67, %v93
    %vm96 = vcmask 261120
    %97 = vst.msk [vmem:[#allocation2] sm:$0xff] %vm96, %v95
    // Predicated region
    $region34: #{tpu_custom_call.1} parent=1 // pred_check
      %p98 = pneg %p61
    $region35: #{tpu_custom_call.1} parent=1 // pred_check_branch
      %100 = sbr.rel (%p98) target = $region37
    $region36: #{tpu_custom_call.1} parent=1 // pred_region
      %v101 = vld [vmem:[#allocation2] sm:$0xff]
      %v102 = vld [vmem:[%s3] sm:$0x1]
      %v104 = vperm.slane %v102, 0
      %v106 = vadd.f32 %v101, %v104
      %v107 = vld [vmem:[#allocation6] sm:$0xff]
      %v108 = vadd.f32 %v107, %v106
      %v109 = vxor.u32 %v108, 2147483648
      %v110 = vmul.f32 %v109, 1.442695
      %v111 = vpow.pop %v110
      %v112 = vadd.f32 %v111, 1.0
      %v113 = vrcp.pop %v112
      %v114 = vmul.f32 %v112, %v113
      %v115 = vsub.f32 1.0, %v114
      %v116 = vmul.f32 %v113, %v115
      %v117 = vadd.f32 %v113, %v116
      %vm118 = vweird.f32 %v112
      %vm119 = vweird.f32 %v113
      %vm120 = vmor %vm118, %vm119
      %v121 = vsel %vm120, %v113, %v117
      %v122 = vand.u32 2147483647, %v112
      %vm123 = vcmp.eq.f32.partialorder %v122, 8.507059e+37
      %v124 = vand.u32 %v112, 2147483648
      %v125 = vor.u32 1.1754944e-38, %v124
      %v126 = vsel %vm123, %v125, %v121
      %v127 = vmul.f32 1.0, %v126
      %v128 = vmul.f32 %v127, %v107
      %129 = vst.msk [vmem:[#allocation9] sm:$0xff] %vm96, %v128
    $region37: #{tpu_custom_call.1} parent=1 // pred_fallthru
      _
    // Predicated region
    $region38: #{tpu_custom_call.1} parent=1 // pred_check
      _
    $region39: #{tpu_custom_call.1} parent=1 // pred_check_branch
      %131 = sbr.rel (0) target = $region41
    $region40: #{tpu_custom_call.1} parent=1 // pred_region
      %133 = vsyncadd [#allocation5], 0
      %s135 = sshll.u32 [#allocation9], 4
      %s136 = int_to_ptr.vmem [resolvable:$true] %s135
      %s137 = sshll.u32 %s4, 4
      %s138 = int_to_ptr.hbm [resolvable:$true] %s137
      %140 = dma.vmem_to_hbm [thread:$0]  %s136, 128, %s138, [#allocation5]
    $region41: #{tpu_custom_call.1} parent=1 // pred_fallthru
      _
    // Predicated region
    $region42: #{tpu_custom_call.1} parent=1 // pred_check
      _
    $region43: #{tpu_custom_call.1} parent=1 // pred_check_branch
      %142 = sbr.rel (0) target = $region45
    $region44: #{tpu_custom_call.1} parent=1 // pred_region
      %144 = dma.done [#allocation5], 128
    $region45: #{tpu_custom_call.1} parent=1 // pred_fallthru
      _
    %145 = vsyncpa [#allocation4], 1
    %146 = vsyncpa [#allocation7], 1
    %147 = vsyncpa [#allocation5], 1

</llo_original>
